<compile_context>
chip_gen: v6e
topology: v6e:2x2x1
jax: 0.10.0
libtpu: 0.0.40
codegen_flags: <defaults>
</compile_context>

<pallas_src>
import jax
import jax.numpy as jnp
from jax.experimental import pallas as pl
from jax.experimental.pallas import tpu as pltpu

_LANE = 128
_SUBLANE = 8
_TARGET_TILE_BYTES = 2 * 1024 * 1024    # ~2 MiB per tile: past the HBM-roofline knee
_MIN_ROW_BLOCKS = 8                     # expose work for megacore sharding (v7x: 2 TCs)
_VMEM_LIMIT_BYTES = 48 * 1024 * 1024    # explicit scoped-VMEM limit, safe on all chips


def _round_up(a, b):
    return ((a + b - 1) // b) * b


def _vmem_budget_bytes():
    """Conservative per-TensorCore VMEM budget for double-buffered f32 tiles."""
    try:
        cap = int(pltpu.get_tpu_info().vmem_capacity_bytes)
    except Exception:
        cap = 64 * 1024 * 1024
    # Assume at most 64 MiB is usable per TensorCore (v7x has 64 MiB/TC and the
    # query may report per-chip numbers on multi-TC parts); keep half for the
    # compiler / pipeline overhead.
    cap = max(32 * 1024 * 1024, min(cap, 64 * 1024 * 1024))
    return cap // 2


# ----------------------------------------------------------------------- kernels
def _log_softmax_kernel(x_ref, o_ref):
    """Fused path: the whole (full-extent) feature axis lives in the tile."""
    x = x_ref[...].astype(jnp.float32)
    m = jnp.max(x, axis=-1, keepdims=True)
    lse = jnp.log(jnp.sum(jnp.exp(x - m), axis=-1, keepdims=True))
    # x - (m + lse): (m + lse) is a (rows, 1) op; no full-tile temp kept live.
    o_ref[...] = (x - (m + lse)).astype(o_ref.dtype)


def _make_lse_stats_kernel(cols, ct, needs_mask):
    """Two-pass path, pass 1: online logsumexp over column tiles."""

    def kernel(x_ref, stat_ref, m_sc, l_sc):
        j = pl.program_id(1)

        @pl.when(j == 0)
        def _():
            m_sc[...] = jnp.full_like(m_sc, -jnp.inf)
            l_sc[...] = jnp.zeros_like(l_sc)

        x = x_ref[...].astype(jnp.float32)
        if needs_mask:
            # Mask the ragged last column tile in-kernel (one cheap VPU select)
            # instead of -inf-padding the input in HBM.
            lane = jax.lax.broadcasted_iota(jnp.int32, x.shape, 1)
            x = jnp.where(j * ct + lane < cols, x, -jnp.inf)

        m_prev = m_sc[...]
        m_new = jnp.maximum(m_prev, jnp.max(x, axis=-1, keepdims=True))
        # Guard the rescale: if the running max is still -inf (all--inf tiles
        # so far), exp(m_prev - m_new) / exp(x - m_new) would produce NaN.
        finite = m_new > -jnp.inf
        scale = jnp.where(finite, jnp.exp(m_prev - m_new), 0.0)
        p = jnp.where(finite, jnp.exp(x - m_new), 0.0)
        l_sc[...] = l_sc[...] * scale + jnp.sum(p, axis=-1, keepdims=True)
        m_sc[...] = m_new

        @pl.when(j == pl.num_programs(1) - 1)
        def _():
            stat_ref[...] = m_sc[...] + jnp.log(l_sc[...])

    return kernel


def _apply_stats_kernel(x_ref, stat_ref, o_ref):
    """Two-pass path, pass 2: out = x - (m + logsumexp)."""
    o_ref[...] = (x_ref[...].astype(jnp.float32) - stat_ref[...]).astype(o_ref.dtype)


# ----------------------------------------------------------------------- wrapper
def log_softmax(x: jax.Array, *, row_tile=None, col_tile=None,
                force_two_pass: bool = False) -> jax.Array:
    """LogSoftmax(dim=-1) for a rank-2 array via Pallas TPU kernels."""
    assert x.ndim == 2, "LogSoftmax_F32_R2 expects a rank-2 input"
    rows, cols = x.shape
    if rows == 0 or cols == 0:
        return jax.nn.log_softmax(x, axis=-1)

    out_dtype = x.dtype
    itemsize = 4  # tiles are processed as f32
    vmem_budget = _vmem_budget_bytes()

    row_bytes = cols * itemsize
    rows8 = _round_up(rows, _SUBLANE)
    # Largest row tile whose double-buffered in+out f32 tiles fit the budget.
    max_rt = (vmem_budget // (4 * row_bytes)) // _SUBLANE * _SUBLANE

    if rows < _SUBLANE:
        use_fused = (not force_two_pass) and (4 * rows * row_bytes <= vmem_budget)
    else:
        use_fused = (not force_two_pass) and (max_rt >= _SUBLANE)

    compiler_params_1d = pltpu.CompilerParams(
        dimension_semantics=("parallel",),
        vmem_limit_bytes=_VMEM_LIMIT_BYTES,
    )

    if use_fused:
        # ---------------- fused single-pass path ----------------
        if rows <= _SUBLANE:
            rt = rows                     # block == full array extent
        else:
            if row_tile is not None:
                rt = int(row_tile)
            else:
                rt = max(_SUBLANE, _TARGET_TILE_BYTES // row_bytes)
                # Keep enough row blocks for both v7x TensorCores to get work.
                want_blocks = min(_MIN_ROW_BLOCKS, rows8 // _SUBLANE)
                if want_blocks > 0:
                    rt = min(rt, pl.cdiv(rows8, want_blocks))
            rt = max(_SUBLANE, min((rt // _SUBLANE) * _SUBLANE, max_rt, rows8))
            n_rb = pl.cdiv(rows, rt)
            # Rebalance so a ragged row count doesn't leave a near-empty tail tile.
            rt = max(_SUBLANE, min(_round_up(pl.cdiv(rows, n_rb), _SUBLANE), max_rt))
        n_rb = pl.cdiv(rows, rt)

        out = pl.pallas_call(
            _log_softmax_kernel,
            out_shape=jax.ShapeDtypeStruct((rows, cols), out_dtype),
            grid_spec=pltpu.PrefetchScalarGridSpec(
                num_scalar_prefetch=0,
                grid=(n_rb,),
                # Last block dim == full feature extent (no 128-multiple pad needed);
                # the partial last row block is handled by Pallas (reads padded,
                # out-of-bounds rows never written back).
                in_specs=[pl.BlockSpec((rt, cols), lambda i: (i, 0))],
                out_specs=pl.BlockSpec((rt, cols), lambda i: (i, 0)),
            ),
            compiler_params=compiler_params_1d,
        )(x)
        return out

    # ---------------- two-pass (cols-tiled, online logsumexp) path ----------------
    # TODO(synk): could fuse the stats + apply sweeps into one pallas_call with an
    # inner pipeline to keep the (rt, 1) stats resident in VMEM; kept as two calls
    # for simplicity (x must be read twice either way).
    if rows < _SUBLANE:
        rt = rows                         # block == full array extent
    else:
        rt = int(row_tile) if row_tile is not None else 256
        rt = max(_SUBLANE, min((rt // _SUBLANE) * _SUBLANE, rows8))
    n_rb = pl.cdiv(rows, rt)

    cols_floor = (cols // _LANE) * _LANE
    if cols <= _LANE:
        ct = cols                         # block == full array extent
        needs_mask = False
    else:
        if col_tile is not None:
            ct = int(col_tile)
        else:
            ct = _TARGET_TILE_BYTES // (rt * itemsize)
        max_ct = max(_LANE, (vmem_budget // (4 * rt * itemsize)) // _LANE * _LANE)
        ct = max(_LANE, min((ct // _LANE) * _LANE, cols_floor, max_ct))
        needs_mask = (cols % ct) != 0
    n_cb = pl.cdiv(cols, ct)

    stats = pl.pallas_call(
        _make_lse_stats_kernel(cols, ct, needs_mask),
        out_shape=jax.ShapeDtypeStruct((rows, 1), jnp.float32),
        grid_spec=pltpu.PrefetchScalarGridSpec(
            num_scalar_prefetch=0,
            grid=(n_rb, n_cb),
            in_specs=[pl.BlockSpec((rt, ct), lambda i, j: (i, j))],
            out_specs=pl.BlockSpec((rt, 1), lambda i, j: (i, 0)),
            scratch_shapes=[pltpu.VMEM((rt, 1), jnp.float32),
                            pltpu.VMEM((rt, 1), jnp.float32)],
        ),
        compiler_params=pltpu.CompilerParams(
            dimension_semantics=("parallel", "arbitrary"),
            vmem_limit_bytes=_VMEM_LIMIT_BYTES,
        ),
    )(x)

    out = pl.pallas_call(
        _apply_stats_kernel,
        out_shape=jax.ShapeDtypeStruct((rows, cols), out_dtype),
        grid_spec=pltpu.PrefetchScalarGridSpec(
            num_scalar_prefetch=0,
            grid=(n_rb, n_cb),
            in_specs=[pl.BlockSpec((rt, ct), lambda i, j: (i, j)),
                      pl.BlockSpec((rt, 1), lambda i, j: (i, 0))],
            out_specs=pl.BlockSpec((rt, ct), lambda i, j: (i, j)),
        ),
        compiler_params=pltpu.CompilerParams(
            dimension_semantics=("parallel", "parallel"),
            vmem_limit_bytes=_VMEM_LIMIT_BYTES,
        ),
    )(x, stats)
    return out


if __name__ == "__main__":
    key = jax.random.PRNGKey(0)
    k1, k2, k3 = jax.random.split(key, 3)

    # Rank-2 f32 input consistent with LogSoftmax_F32_R2 (batch=8, hidden=32).
    x = jax.random.normal(k1, (8, 32), dtype=jnp.float32)
    out = jax.block_until_ready(log_softmax(x))
    ref = jax.nn.log_softmax(x, axis=-1)
    assert out.shape == x.shape and out.dtype == x.dtype
    assert jnp.allclose(out, ref, atol=1e-5, rtol=1e-5)

    # Ragged shape on the default (fused) path: partial last row block and a
    # feature dim that is not a multiple of 128 (full-extent last block dim).
    x2 = jax.random.normal(k2, (50, 200), dtype=jnp.float32)
    out2 = jax.block_until_ready(log_softmax(x2))
    ref2 = jax.nn.log_softmax(x2, axis=-1)
    assert out2.shape == x2.shape and out2.dtype == x2.dtype
    assert jnp.allclose(out2, ref2, atol=1e-5, rtol=1e-5)

    # Compile-check the two-pass (online logsumexp, cols-tiled) path, including
    # the in-kernel masking of the ragged last column tile.
    x3 = jax.random.normal(k3, (13, 200), dtype=jnp.float32)
    out3 = jax.block_until_ready(
        log_softmax(x3, row_tile=8, col_tile=128, force_two_pass=True))
    ref3 = jax.nn.log_softmax(x3, axis=-1)
    assert out3.shape == x3.shape and out3.dtype == x3.dtype
    assert jnp.allclose(out3, ref3, atol=1e-5, rtol=1e-5)

    print("KERNEL_OK")
</pallas_src>

<mosaic_0001>
module attributes {stable_mosaic.version = 11 : i64} {
  func.func @_log_softmax_kernel(%arg0: i32, %arg1: memref<8x32xf32, #tpu.memory_space<vmem>>, %arg2: memref<8x32xf32, #tpu.memory_space<vmem>>) attributes {dimension_semantics = [#tpu.dimension_semantics<parallel>], iteration_bounds = array<i64: 1>, scalar_prefetch = 0 : i64, scratch_operands = 0 : i64, tpu.core_type = #tpu.core_type<tc>, window_params = [{transform_indices = @transform_0, window_bounds = array<i64: 8, 32>}, {transform_indices = @transform_1, window_bounds = array<i64: 8, 32>}]} {
    %c0 = arith.constant 0 : index
    %c0_0 = arith.constant 0 : index
    %0 = vector.load %arg1[%c0, %c0_0] : memref<8x32xf32, #tpu.memory_space<vmem>>, vector<8x32xf32>
    %cst = arith.constant dense<0xFF800000> : vector<8xf32>
    %1 = vector.multi_reduction <maximumf>, %0, %cst [1] : vector<8x32xf32> to vector<8xf32>
    %2 = vector.shape_cast %1 : vector<8xf32> to vector<8x1xf32>
    %3 = vector.broadcast %2 : vector<8x1xf32> to vector<8x32xf32>
    %4 = arith.subf %0, %3 : vector<8x32xf32>
    %5 = math.exp %4 : vector<8x32xf32>
    %cst_1 = arith.constant dense<0.000000e+00> : vector<8xf32>
    %6 = vector.multi_reduction <add>, %5, %cst_1 [1] : vector<8x32xf32> to vector<8xf32>
    %7 = vector.shape_cast %6 : vector<8xf32> to vector<8x1xf32>
    %8 = math.log %7 : vector<8x1xf32>
    %9 = arith.addf %2, %8 : vector<8x1xf32>
    %10 = vector.broadcast %9 : vector<8x1xf32> to vector<8x32xf32>
    %11 = arith.subf %0, %10 : vector<8x32xf32>
    %c0_2 = arith.constant 0 : index
    %c0_3 = arith.constant 0 : index
    %12 = vector.load %arg2[%c0_2, %c0_3] : memref<8x32xf32, #tpu.memory_space<vmem>>, vector<8x32xf32>
    tpu.vector_store %arg2[%c0_2, %c0_3], %11 {strides = array<i32>} : memref<8x32xf32, #tpu.memory_space<vmem>>, vector<8x32xf32>,
    return
  }
  func.func @transform_0(%arg0: i32) -> (i32, i32) {
    %c0_i32 = arith.constant 0 : i32
    %c0_i32_0 = arith.constant 0 : i32
    return %arg0, %c0_i32 : i32, i32
  }
  func.func @transform_1(%arg0: i32) -> (i32, i32) {
    %c0_i32 = arith.constant 0 : i32
    %c0_i32_0 = arith.constant 0 : i32
    return %arg0, %c0_i32 : i32, i32
  }
}

</mosaic_0001>

<llo_original>
// kernel: tpu_custom_call.1
$region0: #{tpu_custom_call.1}
  #allocation0 [shape = 'u32[]', space=smem, size = 0x4, offset = 0x4, fixed_abs, tag = 'smem constant byte address 0x4 - core index']
  #allocation1 [shape = 'u32[144,128]{1,0:T(1,128)}', space=vmem, size = 0x12000, scoped, tag = 'internal scratch']
  %s0 = inlined_call_operand.hbm [shape: f32[8,32], index: 0, kind: input, shape index: {}]
  %s1 = inlined_call_operand.hbm [shape: f32[8,32], index: 1, kind: output, shape index: {}]
  %s2 = sld [smem:[#allocation0]]
  $region18: #{tpu_custom_call.1} parent=0
    _
  %s4 = ssub.s32 1, %s2
  %s5 = scalar_select 0, %s4, %s2
  $region1: #{tpu_custom_call.1} parent=0
    #allocation2 [shape = 'u8[4096]{0}', space=vmem, size = 0x1000, scoped, tag = 'input window, operand 0, single buffered']
    #allocation3 [shape = 's32[1]{0}', space=sflag, size = 0x4, scoped, tag = 'scoped memory for tpu_custom_call.1']
    #allocation4 [shape = 's32[1]{0}', space=sflag, size = 0x4, scoped, tag = 'scoped memory for tpu_custom_call.1']
    #allocation5 [shape = 'u8[4096]{0}', space=vmem, size = 0x1000, scoped, tag = 'output window, operand 0, single buffered']
    %6 = vsyncpa [#allocation3], 0
    %7 = vsyncpa [#allocation4], 0
    // Predicated region
    $region2: #{tpu_custom_call.1} parent=1 // pred_check
      _
    $region3: #{tpu_custom_call.1} parent=1 // pred_check_branch
      %9 = sbr.rel (0) target = $region5
    $region4: #{tpu_custom_call.1} parent=1 // pred_region
      %s11 = ssub.s32 128, 128
      %12 = vsyncadd [#allocation3], %s11
      %s14 = sshll.u32 [#allocation2], 4
      %s15 = int_to_ptr.vmem [resolvable:$true] %s14
      %17 = dma.hbm_to_vmem [thread:$0]  %s0, 128, %s15, [#allocation3]
    $region5: #{tpu_custom_call.1} parent=1 // pred_fallthru
      _
    // Predicated region
    $region6: #{tpu_custom_call.1} parent=1 // pred_check
      _
    $region7: #{tpu_custom_call.1} parent=1 // pred_check_branch
      %19 = sbr.rel (0) target = $region9
    $region8: #{tpu_custom_call.1} parent=1 // pred_region
      %20 = dma.done [#allocation3], 128
    $region9: #{tpu_custom_call.1} parent=1 // pred_fallthru
      _
    %v21 = vld [vmem:[#allocation2] sm:$0xff]
    %vm22 = vcmask 261120
    %v23 = vsel %vm22, %v21, -inf
    %24 = vmax.xlane.f32.xlu0 %v23
    %v25 = vpop.xlane.xlu0 %24
    %v26 = vsub.f32 %v21, %v25
    %v27 = vmul.f32 %v26, 1.442695
    %v28 = vpow.pop %v27
    %v29 = vsel %vm22, %v28, 0.0
    %30 = vadd.xlane.f32.xlu0 %v29
    %v31 = vpop.xlane.xlu0 %30
    %v32 = vlog2.pop %v31
    %v33 = vmul.f32 %v32, 0.6931472
    %v34 = vadd.f32 %v25, %v33
    %v35 = vsub.f32 %v21, %v34
    %36 = vst.msk [vmem:[#allocation5] sm:$0xff] %vm22, %v35
    // Predicated region
    $region10: #{tpu_custom_call.1} parent=1 // pred_check
      _
    $region11: #{tpu_custom_call.1} parent=1 // pred_check_branch
      %38 = sbr.rel (0) target = $region13
    $region12: #{tpu_custom_call.1} parent=1 // pred_region
      %s40 = ssub.s32 128, 128
      %41 = vsyncadd [#allocation4], %s40
      %s43 = sshll.u32 [#allocation5], 4
      %s44 = int_to_ptr.vmem [resolvable:$true] %s43
      %46 = dma.vmem_to_hbm [thread:$0]  %s44, 128, %s1, [#allocation4]
    $region13: #{tpu_custom_call.1} parent=1 // pred_fallthru
      _
    // Predicated region
    $region14: #{tpu_custom_call.1} parent=1 // pred_check
      _
    $region15: #{tpu_custom_call.1} parent=1 // pred_check_branch
      %48 = sbr.rel (0) target = $region17
    $region16: #{tpu_custom_call.1} parent=1 // pred_region
      %49 = dma.done [#allocation4], 128
    $region17: #{tpu_custom_call.1} parent=1 // pred_fallthru
      _
    %50 = vsyncpa [#allocation3], 1
    %51 = vsyncpa [#allocation4], 1

</llo_original>
